<compile_context>
chip_gen: v7x
topology: tpu7x:2x2x1
jax: 0.10.0
libtpu: 0.0.40
codegen_flags: <defaults>
</compile_context>

<pallas_src>
import functools
import math

import jax
import jax.numpy as jnp
from jax.experimental import pallas as pl
from jax.experimental.pallas import tpu as pltpu

_LN_2PI = math.log(2.0 * math.pi)


def _tensorcores_per_device():
    """Best-effort TC count per device; err on the side of 2 (extra partial is cheap)."""
    try:
        kind = jax.devices()[0].device_kind.lower()
    except Exception:
        return 2
    if "lite" in kind or "v5e" in kind or "v6e" in kind:
        return 1
    return 2


def _pdf_kernel(y_ref, mu_ref, scale_ref, out_ref, acc_ref, *,
                pdf, num_partials, chunk_rows, num_chunks, acc_sub,
                valid_in_last_tile, need_mask):
    """One (block_rows, Dp) tile of the negative-log-prob sum.

    Grid = (num_partials, row_tiles). Per-tile work is pure VPU (subtract,
    multiply by a pre-scaled (1, Dp) row, masked-only-on-the-last-tile adds into
    a (acc_sub, Dp) vector accumulator). The single cross-lane reduction happens
    once per partial in the finalize step; the mean over the batch and the
    ln_var / constant terms are applied in the wrapper on tiny arrays.
    """
    p = pl.program_id(0)          # which partial sum (one per TensorCore on 2-TC chips)
    t = pl.program_id(1)          # row-tile index (reduction axis)
    nt = pl.num_programs(1)

    @pl.when(t == 0)
    def _init():
        acc_ref[...] = jnp.zeros_like(acc_ref)

    mu = mu_ref[...].astype(jnp.float32)        # (1, Dp) resident, broadcast over rows
    scale = scale_ref[...].astype(jnp.float32)  # (1, Dp) resident, pre-scaled in wrapper

    def _contrib(y):
        diff = y.astype(jnp.float32) - mu
        if pdf == "gauss":
            return (diff * diff) * scale        # scale = 0.5 * exp(-ln_var)
        w = diff * scale                        # scale = exp(-ln_var)
        # softplus(-w) == logsumexp([0, -w], 0), computed stably.
        adjust = jnp.maximum(-w, 0.0) + jnp.log1p(jnp.exp(-jnp.abs(w)))
        return w + 2.0 * adjust

    def _process(y, base_row, masked):
        c = _contrib(y)
        if masked:
            # Select (NOT multiply) so garbage in the padded overhang never
            # propagates NaN/Inf into the sum.
            rows = jax.lax.broadcasted_iota(jnp.int32, c.shape, 0) + base_row
            c = jnp.where(rows < valid_in_last_tile, c, 0.0)
        dp = c.shape[1]
        # (rows, Dp) -> (acc_sub, Dp): pure VPU (vreg) adds, no per-tile XLU reduce.
        acc_ref[...] += c.reshape(-1, acc_sub, dp).sum(axis=0)

    def _accumulate(masked):
        if num_chunks == 1:
            _process(y_ref[...], 0, masked)
        else:
            def body(i, carry):
                i0 = pl.multiple_of(i * chunk_rows, chunk_rows)
                _process(y_ref[pl.ds(i0, chunk_rows), :], i * chunk_rows, masked)
                return carry
            jax.lax.fori_loop(0, num_chunks, body, 0)

    if need_mask:
        # Only the globally-last tile overhangs the array; every other tile runs
        # the cheap unmasked path.
        is_last_tile = jnp.logical_and(p == num_partials - 1, t == nt - 1)

        @pl.when(jnp.logical_not(is_last_tile))
        def _unmasked():
            _accumulate(False)

        @pl.when(is_last_tile)
        def _masked():
            _accumulate(True)
    else:
        _accumulate(False)

    @pl.when(t == nt - 1)
    def _finalize():
        # Single cross-lane/cross-sublane reduce per partial; lane-dense (8,128)
        # output block, wrapper reads [8*p, 0].
        out_ref[...] = jnp.broadcast_to(jnp.sum(acc_ref[...]), out_ref.shape)


def pdf_forward(Y, mu_weight, ln_var_weight, pdf, *, target_tile_bytes=8 * 1024 * 1024):
    """Pallas wrapper: scalar negative log prob, matching PDF.forward(Y)."""
    assert pdf in ("gauss", "logistic")
    B, D = Y.shape
    assert mu_weight.shape == (1, D) and ln_var_weight.shape == (1, D)

    mu = mu_weight.astype(jnp.float32)
    ln_var = ln_var_weight.astype(jnp.float32)
    inv_var = jnp.exp(-ln_var)                       # tiny (1, D) row, computed once
    scale = 0.5 * inv_var if pdf == "gauss" else inv_var

    # ---- lane-dense repack: with D < 128 most of every (8,128) vreg is empty.
    #      The reshape of the contiguous array is free (row-major bitcast). ----
    if D < 128 and 128 % D == 0 and (B * D) % 128 == 0:
        rep = 128 // D
        Yp = Y.reshape(B * D // 128, 128)
        mu_p = jnp.tile(mu, (1, rep))                # tiny (1, 128)
        scale_p = jnp.tile(scale, (1, rep))
    else:
        # Unpacked fallback. Slicing out a packable bulk would force XLA to copy
        # ~the whole array in HBM (worse than the extra VPU work on a DMA-bound
        # kernel), so we keep the original layout; the tail mask is pl.when-gated.
        Yp, mu_p, scale_p = Y, mu, scale
    Rp, Dp = Yp.shape
    itemsize = jnp.dtype(Yp.dtype).itemsize

    # ---- tiling: ~8 MiB row tiles (double-buffered via BlockSpec). The inner
    #      fori_loop chunks each tile into <=512-row slabs so the contrib
    #      temporary stays a few hundred KiB regardless of tile size. ----
    rows_budget = max(8, (target_tile_bytes // max(1, Dp * itemsize)) // 8 * 8)
    if Rp <= rows_budget:
        block_rows = Rp            # full-extent single tile: no mask needed
        chunk_rows = Rp
        num_chunks = 1
        tiles_total = 1
    else:
        chunk_rows = min(512, rows_budget)                       # multiple of 8
        block_rows = max(chunk_rows, (rows_budget // chunk_rows) * chunk_rows)
        num_chunks = block_rows // chunk_rows
        tiles_total = (Rp + block_rows - 1) // block_rows

    acc_sub = 8 if chunk_rows % 8 == 0 else chunk_rows
    need_mask = tiles_total * block_rows != Rp
    valid_in_last_tile = Rp - (tiles_total - 1) * block_rows

    # Two per-core partial sums only when (a) the tile count splits evenly and
    # (b) the chip actually has 2 TensorCores (v7x / other megacore parts).
    num_partials = 2 if (tiles_total >= 2 and tiles_total % 2 == 0
                         and _tensorcores_per_device() >= 2) else 1
    tiles_per_partial = tiles_total // num_partials

    kernel = functools.partial(
        _pdf_kernel, pdf=pdf, num_partials=num_partials,
        chunk_rows=chunk_rows, num_chunks=num_chunks, acc_sub=acc_sub,
        valid_in_last_tile=valid_in_last_tile, need_mask=need_mask)

    tile_bytes = block_rows * Dp * itemsize
    n = B * D
    out_bytes = num_partials * 8 * 128 * 4
    if pdf == "gauss":
        cost = pl.CostEstimate(flops=4 * n, transcendentals=D,
                               bytes_accessed=n * itemsize + 8 * Dp + out_bytes)
    else:
        cost = pl.CostEstimate(flops=8 * n, transcendentals=2 * n + D,
                               bytes_accessed=n * itemsize + 8 * Dp + out_bytes)

    grid_spec = pltpu.PrefetchScalarGridSpec(
        num_scalar_prefetch=0,
        grid=(num_partials, tiles_per_partial),
        in_specs=[
            pl.BlockSpec((block_rows, Dp),
                         lambda p, t: (p * tiles_per_partial + t, 0)),
            pl.BlockSpec((1, Dp), lambda p, t: (0, 0)),   # mu: resident
            pl.BlockSpec((1, Dp), lambda p, t: (0, 0)),   # scale: resident
        ],
        out_specs=pl.BlockSpec((8, 128), lambda p, t: (p, 0)),
        scratch_shapes=[pltpu.VMEM((acc_sub, Dp), jnp.float32)],
    )

    # Explicit scoped-VMEM limit: 2 double-buffered Y tiles + headroom. Needed so
    # 8+ MiB tiles compile on v5e (16 MiB default) and v6e/v7x (32 MiB default).
    vmem_limit = int(max(16 * 1024 * 1024, 2 * tile_bytes + (4 << 20)))

    partials = pl.pallas_call(
        kernel,
        grid_spec=grid_spec,
        out_shape=jax.ShapeDtypeStruct((8 * num_partials, 128), jnp.float32),
        compiler_params=pltpu.CompilerParams(
            dimension_semantics=("parallel", "arbitrary"),
            vmem_limit_bytes=vmem_limit),
        cost_estimate=cost,
    )(Yp, mu_p, scale_p)

    # One raw sum per partial lives at row 8*p, lane 0.
    raw_sum = jnp.sum(partials[0::8, 0])

    # Mean over batch + constant terms on tiny (1, D) rows (wrapper-side).
    lnv_sum = jnp.sum(ln_var)
    if pdf == "gauss":
        return raw_sum / B + 0.5 * D * _LN_2PI + 0.5 * lnv_sum
    return raw_sum / B + lnv_sum


def pdf_forward_ref(Y, mu, ln_var, pdf):
    """Pure-JAX reference mirroring compute_negative_ln_prob (sanity check)."""
    var = jnp.exp(ln_var)
    if pdf == "gauss":
        return (0.5 * ((Y - mu) ** 2 / var).sum(1).mean()
                + 0.5 * Y.shape[1] * math.log(2.0 * math.pi)
                + 0.5 * ln_var.sum(1).mean())
    whitened = (Y - mu) / var
    adjust = jnp.logaddexp(jnp.zeros_like(whitened), -whitened)
    return (whitened.sum(1).mean() + 2.0 * adjust.sum(1).mean()
            + ln_var.sum(1).mean())


if __name__ == "__main__":
    key = jax.random.PRNGKey(0)
    ok = True
    # (B, D, target_tile_bytes): the small tile budgets force the gridded,
    # masked-tail and two-partial code paths to run even at small test sizes.
    cases = [
        (8, 32, 8 * 1024 * 1024),   # module's natural small shape; packed, 1 tile
        (1000, 32, 32 * 1024),      # lane-dense packed, 4 tiles, masked last tile
        (1001, 32, 32 * 1024),      # unpacked fallback, 4 tiles, masked last tile
        (257, 160, 64 * 1024),      # D > 128, 3 tiles (single partial), masked tail
    ]
    for (B, D, ttb) in cases:
        key, k_y, k_mu, k_lv = jax.random.split(key, 4)
        Y = jax.random.normal(k_y, (B, D), dtype=jnp.float32)
        # nn.Embedding(1, dim) default init ~ N(0, 1); deterministic synthetic init.
        mu_w = jax.random.normal(k_mu, (1, D), dtype=jnp.float32)
        lnv_w = 0.1 * jax.random.normal(k_lv, (1, D), dtype=jnp.float32)
        for pdf in ("gauss", "logistic"):
            out = jax.block_until_ready(
                pdf_forward(Y, mu_w, lnv_w, pdf, target_tile_bytes=ttb))
            ref = pdf_forward_ref(Y, mu_w, lnv_w, pdf)
            if not jnp.allclose(out, ref, rtol=1e-3, atol=1e-3):
                ok = False
                print(f"MISMATCH B={B} D={D} pdf={pdf}: "
                      f"kernel={float(out)} ref={float(ref)}")
    if ok:
        print("KERNEL_OK")
</pallas_src>

<mosaic_0001>
module attributes {stable_mosaic.version = 11 : i64} {
  func.func @_pdf_kernel(%arg0: i32, %arg1: i32, %arg2: memref<2x128xf32, #tpu.memory_space<vmem>>, %arg3: memref<1x128xf32, #tpu.memory_space<vmem>>, %arg4: memref<1x128xf32, #tpu.memory_space<vmem>>, %arg5: memref<8x128xf32, #tpu.memory_space<vmem>>, %arg6: memref<2x128xf32, #tpu.memory_space<vmem>>) attributes {dimension_semantics = [#tpu.dimension_semantics<parallel>, #tpu.dimension_semantics<arbitrary>], iteration_bounds = array<i64: 1, 1>, scalar_prefetch = 0 : i64, scratch_operands = 1 : i64, tpu.core_type = #tpu.core_type<tc>, window_params = [{transform_indices = @transform_0, window_bounds = array<i64: 2, 128>}, {pipeline_mode = #tpu.pipeline_mode<synchronous>, transform_indices = @transform_1, window_bounds = array<i64: 1, 128>}, {pipeline_mode = #tpu.pipeline_mode<synchronous>, transform_indices = @transform_2, window_bounds = array<i64: 1, 128>}, {transform_indices = @transform_3, window_bounds = array<i64: 8, 128>}]} {
    %c0_i32 = arith.constant 0 : i32
    %0 = arith.cmpi eq, %arg1, %c0_i32 : i32
    %1 = arith.extui %0 : i1 to i32
    %c0_i32_0 = arith.constant 0 : i32
    %2 = arith.cmpi ne, %1, %c0_i32_0 : i32
    scf.if %2 {
      %cst_12 = arith.constant 0.000000e+00 : f32
      %19 = vector.broadcast %cst_12 : f32 to vector<2x128xf32>
      %c0_13 = arith.constant 0 : index
      %c0_14 = arith.constant 0 : index
      %20 = vector.load %arg6[%c0_13, %c0_14] : memref<2x128xf32, #tpu.memory_space<vmem>>, vector<2x128xf32>
      tpu.vector_store %arg6[%c0_13, %c0_14], %19 {strides = array<i32>} : memref<2x128xf32, #tpu.memory_space<vmem>>, vector<2x128xf32>,
    } else {
    }
    %c0 = arith.constant 0 : index
    %c0_1 = arith.constant 0 : index
    %3 = vector.load %arg3[%c0, %c0_1] : memref<1x128xf32, #tpu.memory_space<vmem>>, vector<1x128xf32>
    %c0_2 = arith.constant 0 : index
    %c0_3 = arith.constant 0 : index
    %4 = vector.load %arg4[%c0_2, %c0_3] : memref<1x128xf32, #tpu.memory_space<vmem>>, vector<1x128xf32>
    %c0_4 = arith.constant 0 : index
    %c0_5 = arith.constant 0 : index
    %5 = vector.load %arg2[%c0_4, %c0_5] : memref<2x128xf32, #tpu.memory_space<vmem>>, vector<2x128xf32>
    %6 = vector.broadcast %3 : vector<1x128xf32> to vector<2x128xf32>
    %7 = arith.subf %5, %6 : vector<2x128xf32>
    %8 = arith.mulf %7, %7 : vector<2x128xf32>
    %9 = vector.broadcast %4 : vector<1x128xf32> to vector<2x128xf32>
    %10 = arith.mulf %8, %9 : vector<2x128xf32>
    %c0_6 = arith.constant 0 : index
    %c0_7 = arith.constant 0 : index
    %11 = vector.load %arg6[%c0_6, %c0_7] : memref<2x128xf32, #tpu.memory_space<vmem>>, vector<2x128xf32>
    %12 = vector.shape_cast %10 : vector<2x128xf32> to vector<1x2x128xf32>
    %cst = arith.constant dense<0.000000e+00> : vector<2x128xf32>
    %13 = vector.multi_reduction <add>, %12, %cst [0] : vector<1x2x128xf32> to vector<2x128xf32>
    %14 = arith.addf %11, %13 : vector<2x128xf32>
    %c0_8 = arith.constant 0 : index
    %c0_9 = arith.constant 0 : index
    %15 = vector.load %arg6[%c0_8, %c0_9] : memref<2x128xf32, #tpu.memory_space<vmem>>, vector<2x128xf32>
    tpu.vector_store %arg6[%c0_8, %c0_9], %14 {strides = array<i32>} : memref<2x128xf32, #tpu.memory_space<vmem>>, vector<2x128xf32>,
    %c0_i32_10 = arith.constant 0 : i32
    %16 = arith.cmpi eq, %arg1, %c0_i32_10 : i32
    %17 = arith.extui %16 : i1 to i32
    %c0_i32_11 = arith.constant 0 : i32
    %18 = arith.cmpi ne, %17, %c0_i32_11 : i32
    scf.if %18 {
      %c0_12 = arith.constant 0 : index
      %c0_13 = arith.constant 0 : index
      %19 = vector.load %arg6[%c0_12, %c0_13] : memref<2x128xf32, #tpu.memory_space<vmem>>, vector<2x128xf32>
      %20 = vector.shape_cast %19 : vector<2x128xf32> to vector<1x2x128xf32>
      %cst_14 = arith.constant dense<0.000000e+00> : vector<1xf32>
      %21 = vector.multi_reduction <add>, %20, %cst_14 [1, 2] : vector<1x2x128xf32> to vector<1xf32>
      %22 = vector.shape_cast %21 : vector<1xf32> to vector<1x1x1xf32>
      %23 = vector.extract %22[0, 0, 0] : f32 from vector<1x1x1xf32>
      %24 = vector.broadcast %23 : f32 to vector<8x128xf32>
      %c0_15 = arith.constant 0 : index
      %c0_16 = arith.constant 0 : index
      %25 = vector.load %arg5[%c0_15, %c0_16] : memref<8x128xf32, #tpu.memory_space<vmem>>, vector<8x128xf32>
      tpu.vector_store %arg5[%c0_15, %c0_16], %24 {strides = array<i32>} : memref<8x128xf32, #tpu.memory_space<vmem>>, vector<8x128xf32>,
    } else {
    }
    return
  }
  func.func @transform_0(%arg0: i32, %arg1: i32) -> (i32, i32) {
    %c1_i32 = arith.constant 1 : i32
    %0 = arith.muli %arg0, %c1_i32 : i32
    %1 = arith.addi %0, %arg1 : i32
    %c0_i32 = arith.constant 0 : i32
    %c0_i32_0 = arith.constant 0 : i32
    return %1, %c0_i32 : i32, i32
  }
  func.func @transform_1(%arg0: i32, %arg1: i32) -> (i32, i32) {
    %c0_i32 = arith.constant 0 : i32
    %c0_i32_0 = arith.constant 0 : i32
    %c0_i32_1 = arith.constant 0 : i32
    return %c0_i32, %c0_i32_0 : i32, i32
  }
  func.func @transform_2(%arg0: i32, %arg1: i32) -> (i32, i32) {
    %c0_i32 = arith.constant 0 : i32
    %c0_i32_0 = arith.constant 0 : i32
    %c0_i32_1 = arith.constant 0 : i32
    return %c0_i32, %c0_i32_0 : i32, i32
  }
  func.func @transform_3(%arg0: i32, %arg1: i32) -> (i32, i32) {
    %c0_i32 = arith.constant 0 : i32
    %c0_i32_0 = arith.constant 0 : i32
    return %arg0, %c0_i32 : i32, i32
  }
}

</mosaic_0001>

<llo_original>
// kernel: tpu_custom_call.1
$region0: #{tpu_custom_call.1}
  #allocation0 [shape = 'u32[]', space=smem, size = 0x4, offset = 0x4, fixed_abs, tag = 'smem constant byte address 0x4 - core index']
  #allocation1 [shape = 'u32[144,128]{1,0:T(1,128)}', space=vmem, size = 0x12000, scoped, tag = 'internal scratch']
  #allocation2 [shape = 'f32[2,128]{1,0:T(2,128)}', space=vmem, size = 0x400, scoped, tag = 'scratch operand']
  %s0 = inlined_call_operand.hbm [shape: f32[2,128], index: 0, kind: input, shape index: {}]
  %s1 = inlined_call_operand.vmem [shape: f32[1,128], index: 1, kind: input, shape index: {}]
  %s2 = inlined_call_operand.vmem [shape: f32[1,128], index: 2, kind: input, shape index: {}]
  %s3 = inlined_call_operand.hbm [shape: f32[8,128], index: 3, kind: output, shape index: {}]
  %s4 = sld [smem:[#allocation0]]
  $region34: #{tpu_custom_call.1} parent=0
    _
  %s6 = ssub.s32 1, %s4
  %s7 = scalar_select 0, %s6, %s4
  $region1: #{tpu_custom_call.1} parent=0
    #allocation3 [shape = 'u8[1024]{0}', space=vmem, size = 0x400, scoped, tag = 'input window, operand 0, single buffered']
    #allocation4 [shape = 's32[1]{0}', space=sflag, size = 0x4, scoped, tag = 'scoped memory for tpu_custom_call.1']
    #allocation5 [shape = 's32[1]{0}', space=sflag, size = 0x4, scoped, tag = 'scoped memory for tpu_custom_call.1']
    #allocation6 [shape = 'u8[4096]{0}', space=vmem, size = 0x1000, scoped, tag = 'output window, operand 0, single buffered']
    %8 = vsyncpa [#allocation4], 0
    %9 = vsyncpa [#allocation5], 0
    // Predicated region
    $region2: #{tpu_custom_call.1} parent=1 // pred_check
      _
    $region3: #{tpu_custom_call.1} parent=1 // pred_check_branch
      %11 = sbr.rel (0) target = $region5
    $region4: #{tpu_custom_call.1} parent=1 // pred_region
      %s12 = sadd.s32 0, 0
      %s14 = ssub.s32 32, 32
      %15 = vsyncadd [#allocation4], %s14
      %s16 = smul.addr %s12, 32
      %s17 = scalar_lea.hbm %s0, %s16
      %s19 = sshll.u32 [#allocation3], 4
      %s20 = int_to_ptr.vmem [resolvable:$true] %s19
      %22 = dma.hbm_to_vmem [thread:$0]  %s17, 32, %s20, [#allocation4]
    $region5: #{tpu_custom_call.1} parent=1 // pred_fallthru
      _
    // Predicated region
    $region6: #{tpu_custom_call.1} parent=1 // pred_check
      _
    $region7: #{tpu_custom_call.1} parent=1 // pred_check_branch
      %24 = sbr.rel (0) target = $region9
    $region8: #{tpu_custom_call.1} parent=1 // pred_region
      _
    $region9: #{tpu_custom_call.1} parent=1 // pred_fallthru
      _
    // Predicated region
    $region10: #{tpu_custom_call.1} parent=1 // pred_check
      _
    $region11: #{tpu_custom_call.1} parent=1 // pred_check_branch
      %26 = sbr.rel (0) target = $region13
    $region12: #{tpu_custom_call.1} parent=1 // pred_region
      _
    $region13: #{tpu_custom_call.1} parent=1 // pred_fallthru
      _
    // Predicated region
    $region14: #{tpu_custom_call.1} parent=1 // pred_check
      _
    $region15: #{tpu_custom_call.1} parent=1 // pred_check_branch
      %28 = sbr.rel (0) target = $region17
    $region16: #{tpu_custom_call.1} parent=1 // pred_region
      %29 = dma.done [#allocation4], 32
    $region17: #{tpu_custom_call.1} parent=1 // pred_fallthru
      _
    %s30 = sadd.s32 0, 0
    %p31 = scmp.eq.s32.totalorder 0, 0
    // Predicated region
    $region18: #{tpu_custom_call.1} parent=1 // pred_check
      %p32 = pneg %p31
    $region19: #{tpu_custom_call.1} parent=1 // pred_check_branch
      %34 = sbr.rel (%p32) target = $region21
    $region20: #{tpu_custom_call.1} parent=1 // pred_region
      %35 = vst [vmem:[#allocation2] sm:$0x3] 0.0
    $region21: #{tpu_custom_call.1} parent=1 // pred_fallthru
      _
    %v36 = vld [vmem:[%s1] sm:$0x1]
    %v37 = vld [vmem:[%s2] sm:$0x1]
    %v38 = vld [vmem:[#allocation3] sm:$0x3]
    %v40 = vlaneseq
    %v41 = vshrl.u32 %v40, 7
    %v42 = vsub.s32 0, %v41
    %v43 = vrot.slane %v36, %v42
    %v45 = vsub.f32 %v38, %v43
    %v46 = vmul.f32 %v45, %v45
    %v48 = vlaneseq
    %v49 = vshrl.u32 %v48, 7
    %v50 = vsub.s32 0, %v49
    %v51 = vrot.slane %v37, %v50
    %v53 = vmul.f32 %v46, %v51
    %v54 = vld [vmem:[#allocation2] sm:$0x3]
    %v55 = vadd.f32 %v53, 0.0
    %v56 = vadd.f32 %v54, %v55
    %57 = vst [vmem:[#allocation2] sm:$0x3] %v56
    // Predicated region
    $region22: #{tpu_custom_call.1} parent=1 // pred_check
      %p58 = pneg %p31
    $region23: #{tpu_custom_call.1} parent=1 // pred_check_branch
      %60 = sbr.rel (%p58) target = $region25
    $region24: #{tpu_custom_call.1} parent=1 // pred_region
      %v61 = vld [vmem:[#allocation2] sm:$0x3]
      %vm62 = vcmask 1041408
      %v63 = vsel %vm62, %v61, 0.0
      %64 = vadd.xlane.f32.xlu0 %v63
      %v65 = vpop.xlane.xlu0 %64
      %v66 = vrot.slane %v65, 4
      %v67 = vadd.f32 %v65, %v66
      %v68 = vrot.slane %v67, 2
      %v69 = vadd.f32 %v67, %v68
      %v70 = vrot.slane %v69, 1
      %v71 = vadd.f32 %v69, %v70
      %s72 = vtos %v71
      %v73 = vstv %s72
      %74 = vst [vmem:[#allocation6] sm:$0xff] %v73
    $region25: #{tpu_custom_call.1} parent=1 // pred_fallthru
      _
    // Predicated region
    $region26: #{tpu_custom_call.1} parent=1 // pred_check
      _
    $region27: #{tpu_custom_call.1} parent=1 // pred_check_branch
      %76 = sbr.rel (0) target = $region29
    $region28: #{tpu_custom_call.1} parent=1 // pred_region
      %s78 = ssub.s32 128, 128
      %79 = vsyncadd [#allocation5], %s78
      %s81 = sshll.u32 [#allocation6], 4
      %s82 = int_to_ptr.vmem [resolvable:$true] %s81
      %84 = dma.vmem_to_hbm [thread:$0]  %s82, 128, %s3, [#allocation5]
    $region29: #{tpu_custom_call.1} parent=1 // pred_fallthru
      _
    // Predicated region
    $region30: #{tpu_custom_call.1} parent=1 // pred_check
      _
    $region31: #{tpu_custom_call.1} parent=1 // pred_check_branch
      %86 = sbr.rel (0) target = $region33
    $region32: #{tpu_custom_call.1} parent=1 // pred_region
      %87 = dma.done [#allocation5], 128
    $region33: #{tpu_custom_call.1} parent=1 // pred_fallthru
      _
    %88 = vsyncpa [#allocation4], 1
    %89 = vsyncpa [#allocation5], 1

</llo_original>
